<compile_context>
chip_gen: v6e
topology: v6e:2x2x1
jax: 0.10.0
libtpu: 0.0.40
codegen_flags: <defaults>
</compile_context>

<pallas_src>
import functools

import jax
import jax.numpy as jnp
from jax import lax
from jax.experimental import pallas as pl
from jax.experimental.pallas import tpu as pltpu


def _hard_triplet_loss_kernel(emb_ref, lab_col_ref, lab_row_ref, out_ref,
                              acc_ref, cnt_ref, *, margin, n_chunk, eps=1e-16):
    x = emb_ref[...]                                # native dtype; accumulate in f32
    B = x.shape[0]

    # ---- pairwise euclidean distance (squared=False path of _pairwise_distance) ----
    cor = lax.dot_general(x, x, (((1,), (1,)), ((), ())),
                          preferred_element_type=jnp.float32)          # (B, B) = x @ x.T (MXU)
    row = lax.broadcasted_iota(jnp.int32, (B, B), 0)
    col = lax.broadcasted_iota(jnp.int32, (B, B), 1)
    eye = (row == col).astype(jnp.float32)
    diag = cor * eye                                                    # single masked product
    norm_col = jnp.sum(diag, axis=1, keepdims=True)                     # (B, 1) = diag(cor)
    norm_row = jnp.sum(diag, axis=0, keepdims=True)                     # (1, B)
    d2 = jnp.maximum(norm_col - 2.0 * cor + norm_row, 0.0)
    zero_mask = (d2 == 0.0).astype(jnp.float32)
    dist = jnp.sqrt(d2 + zero_mask * eps) * (1.0 - zero_mask)           # (B, B), symmetric

    # ---- masks (a!=n and p!=n are implied by label_eq[a,p]==1 and label_eq[a,n]==0) ----
    label_eq = (lab_col_ref[...] == lab_row_ref[...]).astype(jnp.float32)   # (B, B), symmetric
    pos_mask = (1.0 - eye) * label_eq                                   # a != p and same label
    neg_mask = 1.0 - label_eq                                           # different label

    # ---- zero the (B, B) accumulators ----
    acc_ref[...] = jnp.zeros_like(acc_ref)
    cnt_ref[...] = jnp.zeros_like(cnt_ref)

    # ---- chunked loop over the negative index n ----
    # tl[n, p, a] with (p, a) on (sublane, lane). dist / pos_mask are symmetric so the
    # [None, :, :] broadcasts need no relayout, and the per-n terms (rows of dist / neg_mask)
    # broadcast along the sublane direction only.
    for n0 in range(0, B, n_chunk):
        c = min(n_chunk, B - n0)
        d_na = dist[n0:n0 + c, :]                    # (c, B): d[a, n]   (by symmetry)
        neg_na = neg_mask[n0:n0 + c, :]              # (c, B): labels[a] != labels[n]
        loss = dist[None, :, :] - d_na[:, None, :] + margin             # (c, B_p, B_a)
        mask = pos_mask[None, :, :] * neg_na[:, None, :]                # (c, B_p, B_a)
        tl = jnp.maximum(loss * mask, 0.0)
        acc_ref[...] += jnp.sum(tl, axis=0)
        cnt_ref[...] += jnp.sum((tl > eps).astype(jnp.float32), axis=0)

    # ---- single final reduction + scalar store (SMEM) ----
    total = jnp.sum(acc_ref[...])
    num_hard = jnp.sum(cnt_ref[...])
    out_ref[0, 0] = total / (num_hard + eps)


def hard_triplet_loss(embeddings, labels, margin=0.1):
    """embeddings: (B, D) float (native dtype); labels: (B,) int. Returns scalar triplet loss."""
    B, D = embeddings.shape
    lab_col = labels.reshape(B, 1).astype(jnp.int32)
    lab_row = labels.reshape(1, B).astype(jnp.int32)
    # chunk size for the negative axis: keep the (c, B, B) f32 slabs to a few MiB of VMEM
    n_chunk = max(1, min(B, 128, (2 * 1024 * 1024) // max(1, 4 * B * B)))
    out = pl.pallas_call(
        functools.partial(_hard_triplet_loss_kernel,
                          margin=float(margin), n_chunk=int(n_chunk)),
        out_shape=jax.ShapeDtypeStruct((1, 1), jnp.float32),
        in_specs=[
            pl.BlockSpec(memory_space=pltpu.MemorySpace.VMEM),
            pl.BlockSpec(memory_space=pltpu.MemorySpace.VMEM),
            pl.BlockSpec(memory_space=pltpu.MemorySpace.VMEM),
        ],
        out_specs=pl.BlockSpec(memory_space=pltpu.MemorySpace.SMEM),
        scratch_shapes=[
            pltpu.VMEM((B, B), jnp.float32),   # deferred-reduction accumulator (sum)
            pltpu.VMEM((B, B), jnp.float32),   # deferred-reduction accumulator (count)
        ],
    )(embeddings, lab_col, lab_row)
    return out[0, 0]


def _reference_loss(embeddings, labels, margin=0.1, eps=1e-16):
    """Pure-JAX mirror of the PyTorch forward (hardest=False, squared=False)."""
    x = embeddings.astype(jnp.float32)
    cor = x @ x.T
    norm = jnp.diag(cor)
    d2 = jnp.maximum(norm[:, None] - 2.0 * cor + norm[None, :], 0.0)
    zm = (d2 == 0.0).astype(jnp.float32)
    d = jnp.sqrt(d2 + zm * eps) * (1.0 - zm)
    B = x.shape[0]
    not_eye = 1.0 - jnp.eye(B, dtype=jnp.float32)
    lab_eq = (labels[:, None] == labels[None, :]).astype(jnp.float32)
    distinct = not_eye[:, :, None] * not_eye[:, None, :] * not_eye[None, :, :]
    valid = lab_eq[:, :, None] * (1.0 - lab_eq)[:, None, :]
    mask = distinct * valid
    loss = d[:, :, None] - d[:, None, :] + margin
    tl = jnp.maximum(loss * mask, 0.0)
    num = jnp.sum((tl > eps).astype(jnp.float32))
    return jnp.sum(tl) / (num + eps)


if __name__ == "__main__":
    key = jax.random.PRNGKey(0)
    B, D = 8, 32
    emb = jax.random.normal(key, (B, D), dtype=jnp.float32)
    labels = jnp.array([0, 0, 1, 1, 2, 2, 3, 3], dtype=jnp.int32)

    loss = hard_triplet_loss(emb, labels, margin=0.1)
    loss = jax.block_until_ready(loss)

    ref = _reference_loss(emb, labels, margin=0.1)
    assert jnp.allclose(loss, ref, rtol=1e-5, atol=1e-5), (loss, ref)
    print("KERNEL_OK")
</pallas_src>

<mosaic_0001>
module attributes {stable_mosaic.version = 11 : i64} {
  func.func @_hard_triplet_loss_kernel(%arg0: memref<8x32xf32, #tpu.memory_space<vmem>>, %arg1: memref<8x1xi32, #tpu.memory_space<vmem>>, %arg2: memref<1x8xi32, #tpu.memory_space<vmem>>, %arg3: memref<1x1xf32, #tpu.memory_space<smem>>, %arg4: memref<8x8xf32, #tpu.memory_space<vmem>>, %arg5: memref<8x8xf32, #tpu.memory_space<vmem>>) attributes {dimension_semantics = [], scalar_prefetch = 0 : i64, scratch_operands = 2 : i64, tpu.core_type = #tpu.core_type<tc>} {
    %c0 = arith.constant 0 : index
    %c0_0 = arith.constant 0 : index
    %0 = vector.load %arg0[%c0, %c0_0] : memref<8x32xf32, #tpu.memory_space<vmem>>, vector<8x32xf32>
    %cst = arith.constant dense<0.000000e+00> : vector<8x8xf32>
    %1 = tpu.matmul %0, %0, %cst {dimension_numbers = #tpu.dot_dimension_numbers<[1], [1], [0], [0], [0, 0, 1, 0], [], []>} : vector<8x32xf32>, vector<8x32xf32>, vector<8x8xf32> -> vector<8x8xf32>
    %2 = tpu.iota {dimensions = array<i32: 0>} : vector<8x8xi32>
    %3 = tpu.iota {dimensions = array<i32: 1>} : vector<8x8xi32>
    %4 = arith.cmpi eq, %2, %3 : vector<8x8xi32>
    %5 = arith.extui %4 : vector<8x8xi1> to vector<8x8xi32>
    %6 = arith.sitofp %5 : vector<8x8xi32> to vector<8x8xf32>
    %7 = arith.mulf %1, %6 : vector<8x8xf32>
    %cst_1 = arith.constant dense<0.000000e+00> : vector<8xf32>
    %8 = vector.multi_reduction <add>, %7, %cst_1 [1] : vector<8x8xf32> to vector<8xf32>
    %9 = vector.shape_cast %8 : vector<8xf32> to vector<8x1xf32>
    %cst_2 = arith.constant dense<0.000000e+00> : vector<8xf32>
    %10 = vector.multi_reduction <add>, %7, %cst_2 [0] : vector<8x8xf32> to vector<8xf32>
    %11 = vector.shape_cast %10 : vector<8xf32> to vector<1x8xf32>
    %cst_3 = arith.constant 2.000000e+00 : f32
    %12 = vector.broadcast %cst_3 : f32 to vector<8x8xf32>
    %13 = arith.mulf %12, %1 : vector<8x8xf32>
    %14 = vector.broadcast %9 : vector<8x1xf32> to vector<8x8xf32>
    %15 = arith.subf %14, %13 : vector<8x8xf32>
    %16 = vector.broadcast %11 : vector<1x8xf32> to vector<8x8xf32>
    %17 = arith.addf %15, %16 : vector<8x8xf32>
    %cst_4 = arith.constant 0.000000e+00 : f32
    %18 = vector.broadcast %cst_4 : f32 to vector<8x8xf32>
    %19 = arith.maximumf %17, %18 : vector<8x8xf32>
    %cst_5 = arith.constant 0.000000e+00 : f32
    %20 = vector.broadcast %cst_5 : f32 to vector<8x8xf32>
    %21 = arith.cmpf oeq, %19, %20 : vector<8x8xf32>
    %22 = arith.extui %21 : vector<8x8xi1> to vector<8x8xi32>
    %23 = arith.sitofp %22 : vector<8x8xi32> to vector<8x8xf32>
    %cst_6 = arith.constant 1.000000e-16 : f32
    %24 = vector.broadcast %cst_6 : f32 to vector<8x8xf32>
    %25 = arith.mulf %23, %24 : vector<8x8xf32>
    %26 = arith.addf %19, %25 : vector<8x8xf32>
    %27 = math.sqrt %26 : vector<8x8xf32>
    %cst_7 = arith.constant 1.000000e+00 : f32
    %28 = vector.broadcast %cst_7 : f32 to vector<8x8xf32>
    %29 = arith.subf %28, %23 : vector<8x8xf32>
    %30 = arith.mulf %27, %29 : vector<8x8xf32>
    %c0_8 = arith.constant 0 : index
    %c0_9 = arith.constant 0 : index
    %31 = vector.load %arg1[%c0_8, %c0_9] : memref<8x1xi32, #tpu.memory_space<vmem>>, vector<8x1xi32>
    %c0_10 = arith.constant 0 : index
    %c0_11 = arith.constant 0 : index
    %32 = vector.load %arg2[%c0_10, %c0_11] : memref<1x8xi32, #tpu.memory_space<vmem>>, vector<1x8xi32>
    %33 = vector.broadcast %31 : vector<8x1xi32> to vector<8x8xi32>
    %34 = vector.broadcast %32 : vector<1x8xi32> to vector<8x8xi32>
    %35 = arith.cmpi eq, %33, %34 : vector<8x8xi32>
    %36 = arith.extui %35 : vector<8x8xi1> to vector<8x8xi32>
    %37 = arith.sitofp %36 : vector<8x8xi32> to vector<8x8xf32>
    %cst_12 = arith.constant 1.000000e+00 : f32
    %38 = vector.broadcast %cst_12 : f32 to vector<8x8xf32>
    %39 = arith.subf %38, %6 : vector<8x8xf32>
    %40 = arith.mulf %39, %37 : vector<8x8xf32>
    %cst_13 = arith.constant 1.000000e+00 : f32
    %41 = vector.broadcast %cst_13 : f32 to vector<8x8xf32>
    %42 = arith.subf %41, %37 : vector<8x8xf32>
    %cst_14 = arith.constant 0.000000e+00 : f32
    %43 = vector.broadcast %cst_14 : f32 to vector<8x8xf32>
    %c0_15 = arith.constant 0 : index
    %c0_16 = arith.constant 0 : index
    %44 = vector.load %arg4[%c0_15, %c0_16] : memref<8x8xf32, #tpu.memory_space<vmem>>, vector<8x8xf32>
    tpu.vector_store %arg4[%c0_15, %c0_16], %43 {strides = array<i32>} : memref<8x8xf32, #tpu.memory_space<vmem>>, vector<8x8xf32>,
    %cst_17 = arith.constant 0.000000e+00 : f32
    %45 = vector.broadcast %cst_17 : f32 to vector<8x8xf32>
    %c0_18 = arith.constant 0 : index
    %c0_19 = arith.constant 0 : index
    %46 = vector.load %arg5[%c0_18, %c0_19] : memref<8x8xf32, #tpu.memory_space<vmem>>, vector<8x8xf32>
    tpu.vector_store %arg5[%c0_18, %c0_19], %45 {strides = array<i32>} : memref<8x8xf32, #tpu.memory_space<vmem>>, vector<8x8xf32>,
    %47 = vector.shape_cast %30 : vector<8x8xf32> to vector<1x8x8xf32>
    %48 = vector.shape_cast %30 : vector<8x8xf32> to vector<8x1x8xf32>
    %49 = vector.broadcast %47 : vector<1x8x8xf32> to vector<8x8x8xf32>
    %50 = vector.broadcast %48 : vector<8x1x8xf32> to vector<8x8x8xf32>
    %51 = arith.subf %49, %50 : vector<8x8x8xf32>
    %cst_20 = arith.constant 1.000000e-01 : f32
    %52 = vector.broadcast %cst_20 : f32 to vector<8x8x8xf32>
    %53 = arith.addf %51, %52 : vector<8x8x8xf32>
    %54 = vector.shape_cast %40 : vector<8x8xf32> to vector<1x8x8xf32>
    %55 = vector.shape_cast %42 : vector<8x8xf32> to vector<8x1x8xf32>
    %56 = vector.broadcast %54 : vector<1x8x8xf32> to vector<8x8x8xf32>
    %57 = vector.broadcast %55 : vector<8x1x8xf32> to vector<8x8x8xf32>
    %58 = arith.mulf %56, %57 : vector<8x8x8xf32>
    %59 = arith.mulf %53, %58 : vector<8x8x8xf32>
    %cst_21 = arith.constant 0.000000e+00 : f32
    %60 = vector.broadcast %cst_21 : f32 to vector<8x8x8xf32>
    %61 = arith.maximumf %59, %60 : vector<8x8x8xf32>
    %c0_22 = arith.constant 0 : index
    %c0_23 = arith.constant 0 : index
    %62 = vector.load %arg4[%c0_22, %c0_23] : memref<8x8xf32, #tpu.memory_space<vmem>>, vector<8x8xf32>
    %cst_24 = arith.constant dense<0.000000e+00> : vector<8x8xf32>
    %63 = vector.multi_reduction <add>, %61, %cst_24 [0] : vector<8x8x8xf32> to vector<8x8xf32>
    %64 = arith.addf %62, %63 : vector<8x8xf32>
    %c0_25 = arith.constant 0 : index
    %c0_26 = arith.constant 0 : index
    %65 = vector.load %arg4[%c0_25, %c0_26] : memref<8x8xf32, #tpu.memory_space<vmem>>, vector<8x8xf32>
    tpu.vector_store %arg4[%c0_25, %c0_26], %64 {strides = array<i32>} : memref<8x8xf32, #tpu.memory_space<vmem>>, vector<8x8xf32>,
    %c0_27 = arith.constant 0 : index
    %c0_28 = arith.constant 0 : index
    %66 = vector.load %arg5[%c0_27, %c0_28] : memref<8x8xf32, #tpu.memory_space<vmem>>, vector<8x8xf32>
    %cst_29 = arith.constant 1.000000e-16 : f32
    %67 = vector.broadcast %cst_29 : f32 to vector<8x8x8xf32>
    %68 = arith.cmpf ogt, %61, %67 : vector<8x8x8xf32>
    %69 = arith.extui %68 : vector<8x8x8xi1> to vector<8x8x8xi32>
    %70 = arith.sitofp %69 : vector<8x8x8xi32> to vector<8x8x8xf32>
    %cst_30 = arith.constant dense<0.000000e+00> : vector<8x8xf32>
    %71 = vector.multi_reduction <add>, %70, %cst_30 [0] : vector<8x8x8xf32> to vector<8x8xf32>
    %72 = arith.addf %66, %71 : vector<8x8xf32>
    %c0_31 = arith.constant 0 : index
    %c0_32 = arith.constant 0 : index
    %73 = vector.load %arg5[%c0_31, %c0_32] : memref<8x8xf32, #tpu.memory_space<vmem>>, vector<8x8xf32>
    tpu.vector_store %arg5[%c0_31, %c0_32], %72 {strides = array<i32>} : memref<8x8xf32, #tpu.memory_space<vmem>>, vector<8x8xf32>,
    %c0_33 = arith.constant 0 : index
    %c0_34 = arith.constant 0 : index
    %74 = vector.load %arg4[%c0_33, %c0_34] : memref<8x8xf32, #tpu.memory_space<vmem>>, vector<8x8xf32>
    %75 = vector.shape_cast %74 : vector<8x8xf32> to vector<1x8x8xf32>
    %cst_35 = arith.constant dense<0.000000e+00> : vector<1xf32>
    %76 = vector.multi_reduction <add>, %75, %cst_35 [1, 2] : vector<1x8x8xf32> to vector<1xf32>
    %77 = vector.shape_cast %76 : vector<1xf32> to vector<1x1x1xf32>
    %78 = vector.extract %77[0, 0, 0] : f32 from vector<1x1x1xf32>
    %c0_36 = arith.constant 0 : index
    %c0_37 = arith.constant 0 : index
    %79 = vector.load %arg5[%c0_36, %c0_37] : memref<8x8xf32, #tpu.memory_space<vmem>>, vector<8x8xf32>
    %80 = vector.shape_cast %79 : vector<8x8xf32> to vector<1x8x8xf32>
    %cst_38 = arith.constant dense<0.000000e+00> : vector<1xf32>
    %81 = vector.multi_reduction <add>, %80, %cst_38 [1, 2] : vector<1x8x8xf32> to vector<1xf32>
    %82 = vector.shape_cast %81 : vector<1xf32> to vector<1x1x1xf32>
    %83 = vector.extract %82[0, 0, 0] : f32 from vector<1x1x1xf32>
    %cst_39 = arith.constant 1.000000e-16 : f32
    %84 = arith.addf %83, %cst_39 : f32
    %85 = arith.divf %78, %84 : f32
    %c0_40 = arith.constant 0 : index
    %c0_41 = arith.constant 0 : index
    %86 = memref.load %arg3[%c0_40, %c0_41] : memref<1x1xf32, #tpu.memory_space<smem>>
    memref.store %85, %arg3[%c0_40, %c0_41] : memref<1x1xf32, #tpu.memory_space<smem>>
    return
  }
}

</mosaic_0001>

<llo_original>
// kernel: tpu_custom_call.1
$region0: #{tpu_custom_call.1}
  #allocation0 [shape = 'u32[]', space=smem, size = 0x4, offset = 0x4, fixed_abs, tag = 'smem constant byte address 0x4 - core index']
  #allocation1 [shape = 'u32[144,128]{1,0:T(1,128)}', space=vmem, size = 0x12000, scoped, tag = 'internal scratch']
  #allocation2 [shape = 'f32[8,8]{1,0:T(8,128)}', space=vmem, size = 0x1000, scoped, tag = 'scratch operand']
  #allocation3 [shape = 'f32[8,8]{1,0:T(8,128)}', space=vmem, size = 0x1000, scoped, tag = 'scratch operand']
  %s0 = inlined_call_operand.vmem [shape: f32[8,32], index: 0, kind: input, shape index: {}]
  %s1 = inlined_call_operand.vmem [shape: s32[8,1], index: 1, kind: input, shape index: {}]
  %s2 = inlined_call_operand.vmem [shape: s32[1,8], index: 2, kind: input, shape index: {}]
  %s3 = inlined_call_operand.hbm [shape: f32[1,1], index: 3, kind: output, shape index: {}]
  %s4 = sld [smem:[#allocation0]]
  $region22: #{tpu_custom_call.1} parent=0
    _
  %s6 = ssub.s32 1, %s4
  %s7 = scalar_select 0, %s6, %s4
  $region1: #{tpu_custom_call.1} parent=0
    #allocation4 [shape = 'u8[512]{0}', space=smem, size = 0x200, scoped, tag = 'output window, operand 0, single buffered']
    #allocation5 [shape = 's32[1]{0}', space=sflag, size = 0x4, scoped, tag = 'scoped memory for tpu_custom_call.1']
    %8 = vsyncpa [#allocation5], 0
    // Predicated region
    $region2: #{tpu_custom_call.1} parent=1 // pred_check
      _
    $region3: #{tpu_custom_call.1} parent=1 // pred_check_branch
      %10 = sbr.rel (0) target = $region5
    $region4: #{tpu_custom_call.1} parent=1 // pred_region
      _
    $region5: #{tpu_custom_call.1} parent=1 // pred_fallthru
      _
    // Predicated region
    $region6: #{tpu_custom_call.1} parent=1 // pred_check
      _
    $region7: #{tpu_custom_call.1} parent=1 // pred_check_branch
      %12 = sbr.rel (0) target = $region9
    $region8: #{tpu_custom_call.1} parent=1 // pred_region
      _
    $region9: #{tpu_custom_call.1} parent=1 // pred_fallthru
      _
    // Predicated region
    $region10: #{tpu_custom_call.1} parent=1 // pred_check
      _
    $region11: #{tpu_custom_call.1} parent=1 // pred_check_branch
      %14 = sbr.rel (0) target = $region13
    $region12: #{tpu_custom_call.1} parent=1 // pred_region
      _
    $region13: #{tpu_custom_call.1} parent=1 // pred_fallthru
      _
    %v15 = vld [vmem:[%s0] sm:$0xff]
    %vm16 = vcmask 261120
    %v18 = vsel %vm16, %v15, 0
    %20 = vmatprep.subr.mxu0 0.0
    %21 = vmatpush1.xpose.msra.mxu0 0.0
    %22 = vmatprep.subr.mxu0 0.0
    %23 = vmatpush1.xpose.msra.mxu0 0.0
    %24 = vmatprep.subr.mxu0 0.0
    %25 = vmatpush1.xpose.msra.mxu0 0.0
    %26 = vmatprep.subr.mxu0 0.0
    %27 = vmatpush1.xpose.msra.mxu0 0.0
    %28 = vmatprep.subr.mxu0 0.0
    %29 = vmatpush1.xpose.msra.mxu0 0.0
    %30 = vmatprep.subr.mxu0 0.0
    %31 = vmatpush1.xpose.msra.mxu0 0.0
    %32 = vmatprep.subr.mxu0 0.0
    %33 = vmatpush1.xpose.msra.mxu0 0.0
    %34 = vmatprep.subr.mxu0 0.0
    %35 = vmatpush1.xpose.msra.mxu0 0.0
    %36 = vmatprep.subr.mxu0 0.0
    %37 = vmatpush1.xpose.msra.mxu0 0.0
    %38 = vmatprep.subr.mxu0 0.0
    %39 = vmatpush1.xpose.msra.mxu0 0.0
    %40 = vmatprep.subr.mxu0 0.0
    %41 = vmatpush1.xpose.msra.mxu0 0.0
    %42 = vmatprep.subr.mxu0 0.0
    %43 = vmatpush1.xpose.msra.mxu0 0.0
    %44 = vmatprep.subr.mxu0 0.0
    %45 = vmatpush1.xpose.msra.mxu0 0.0
    %46 = vmatprep.subr.mxu0 0.0
    %47 = vmatpush1.xpose.msra.mxu0 0.0
    %48 = vmatprep.subr.mxu0 0.0
    %49 = vmatpush1.xpose.msra.mxu0 0.0
    %50 = vmatprep.subr.mxu0 0.0
    %51 = vmatpush1.xpose.msra.mxu0 %v18
    %52 = vmatprep.subr.mxu0 0.0
    %53 = vmatpush2.xpose.msra.mxu0 0.0
    %54 = vmatprep.subr.mxu0 0.0
    %55 = vmatpush2.xpose.msra.mxu0 0.0
    %56 = vmatprep.subr.mxu0 0.0
    %57 = vmatpush2.xpose.msra.mxu0 0.0
    %58 = vmatprep.subr.mxu0 0.0
    %59 = vmatpush2.xpose.msra.mxu0 0.0
    %60 = vmatprep.subr.mxu0 0.0
    %61 = vmatpush2.xpose.msra.mxu0 0.0
    %62 = vmatprep.subr.mxu0 0.0
    %63 = vmatpush2.xpose.msra.mxu0 0.0
    %64 = vmatprep.subr.mxu0 0.0
    %65 = vmatpush2.xpose.msra.mxu0 0.0
    %66 = vmatprep.subr.mxu0 0.0
    %67 = vmatpush2.xpose.msra.mxu0 0.0
    %68 = vmatprep.subr.mxu0 0.0
    %69 = vmatpush2.xpose.msra.mxu0 0.0
    %70 = vmatprep.subr.mxu0 0.0
    %71 = vmatpush2.xpose.msra.mxu0 0.0
    %72 = vmatprep.subr.mxu0 0.0
    %73 = vmatpush2.xpose.msra.mxu0 0.0
    %74 = vmatprep.subr.mxu0 0.0
    %75 = vmatpush2.xpose.msra.mxu0 0.0
    %76 = vmatprep.subr.mxu0 0.0
    %77 = vmatpush2.xpose.msra.mxu0 0.0
    %78 = vmatprep.subr.mxu0 0.0
    %79 = vmatpush2.xpose.msra.mxu0 0.0
    %80 = vmatprep.subr.mxu0 0.0
    %81 = vmatpush2.xpose.msra.mxu0 0.0
    %82 = vmatprep.subr.mxu0 0.0
    %83 = vmatpush2.xpose.msra.mxu0 0.0
    %84 = vmatprep.mubr.f32.mxu0 0.0
    %85 = vmatmul.mubr.f32.gmra.mxu0 %v18
    %v86 = vpop.f32.mrf.mxu0
    %v87 = vadd.f32 0.0, %v86
    %v88 = vpop.f32.mrf.mxu0
    %89 = vdwg.mxu0
    %v90 = vlaneseq
    %v91 = vshrl.u32 %v90, 7
    %v92 = vlaneseq
    %v93 = vand.u32 %v92, 127
    %vm94 = vcmp.eq.s32.totalorder %v91, %v93
    %v95 = vsel %vm94, 1, 0
    %v96 = vcvt.s32.f32 %v95
    %v97 = vmul.f32 %v87, %v96
    %vm98 = vcmask 64512
    %v99 = vsel %vm98, %v97, 0.0
    %100 = vadd.xlane.f32.xlu0 %v99
    %v101 = vpop.xlane.xlu0 %100
    %v102 = vrot.slane %v99, 4
    %v103 = vadd.f32 %v99, %v102
    %v104 = vrot.slane %v103, 2
    %v105 = vadd.f32 %v103, %v104
    %v106 = vrot.slane %v105, 1
    %v107 = vadd.f32 %v105, %v106
    %v108 = vmul.f32 %v87, 2.0
    %v109 = vsub.f32 %v101, %v108
    %v110 = vadd.f32 %v109, %v107
    %v111 = vmax.f32 %v110, 0.0
    %vm112 = vcmp.eq.f32.partialorder %v111, 0.0
    %v113 = vsel %vm112, 1, 0
    %v114 = vcvt.s32.f32 %v113
    %v115 = vmul.f32 %v114, 1e-16
    %v116 = vadd.f32 %v111, %v115
    %v117 = vrsqrt.pop %v116
    %v118 = vmul.f32 %v116, %v117
    %vm119 = vcmp.eq.f32.partialorder %v116, inf
    %v120 = vsel %vm119, %v116, %v118
    %vm121 = vcmp.eq.f32.partialorder %v116, 0.0
    %v122 = vand.u32 %v116, 2147483648
    %v123 = vsel %vm121, %v122, %v120
    %v124 = vsub.f32 1.0, %v114
    %v125 = vmul.f32 %v123, %v124
    %v126 = vld [vmem:[%s1] sm:$0xff]
    %v127 = vld [vmem:[%s2] sm:$0x1]
    %128 = vset.pattern.permute.xlu0 0
    %129 = vperm.xlu0 %128, %v126
    %v130 = vpop.permute.xlu0 %129
    %v131 = vlaneseq
    %v132 = vshrl.u32 %v131, 7
    %v133 = vsub.s32 0, %v132
    %v134 = vrot.slane %v127, %v133
    %vm135 = vcmp.eq.s32.totalorder %v130, %v134
    %v136 = vsel %vm135, 1, 0
    %v137 = vcvt.s32.f32 %v136
    %v138 = vsub.f32 1.0, %v96
    %v139 = vmul.f32 %v138, %v137
    %v140 = vsub.f32 1.0, %v137
    %141 = vst.msk [vmem:[#allocation2] sm:$0xff] %vm98, 0.0
    %142 = vst.msk [vmem:[#allocation3] sm:$0xff] %vm98, 0.0
    %v144 = vcombine.high %v125, %v125
    %v146 = vunpack.c.l.s4 1966171168
    %v147 = vunpack.c.0.s8 %v146
    %v148 = vlaneseq
    %v149 = vshrl.u32 %v148, 7
    %v150 = vsub.s32 %v147, %v149
    %v151 = vrot.slane %v125, %v150
    %v153 = vunpack.c.l.s4 1966171168
    %v154 = vunpack.c.0.s8 %v153
    %v155 = vlaneseq
    %v156 = vshrl.u32 %v155, 7
    %v157 = vsub.s32 %v154, %v156
    %v158 = vrot.slane %v144, %v157
    %v159 = vcombine.high %v151, %v151
    %v160 = vcombine.high %v158, %v158
    %v162 = vunpack.c.l.s4 1966171168
    %v163 = vunpack.c.0.s8 %v162
    %v164 = vlaneseq
    %v165 = vshrl.u32 %v164, 7
    %v166 = vsub.s32 %v163, %v165
    %v167 = vrot.slane %v151, %v166
    %v169 = vunpack.c.l.s4 1966171168
    %v170 = vunpack.c.0.s8 %v169
    %v171 = vlaneseq
    %v172 = vshrl.u32 %v171, 7
    %v173 = vsub.s32 %v170, %v172
    %v174 = vrot.slane %v158, %v173
    %v176 = vunpack.c.l.s4 1966171168
    %v177 = vunpack.c.0.s8 %v176
    %v178 = vlaneseq
    %v179 = vshrl.u32 %v178, 7
    %v180 = vsub.s32 %v177, %v179
    %v181 = vrot.slane %v159, %v180
    %v183 = vunpack.c.l.s4 1966171168
    %v184 = vunpack.c.0.s8 %v183
    %v185 = vlaneseq
    %v186 = vshrl.u32 %v185, 7
    %v187 = vsub.s32 %v184, %v186
    %v188 = vrot.slane %v160, %v187
    %v189 = vcombine.high %v167, %v167
    %v190 = vcombine.high %v174, %v174
    %v191 = vcombine.high %v181, %v181
    %v192 = vcombine.high %v188, %v188
    %v193 = vlaneseq
    %v194 = vshrl.u32 %v193, 7
    %v195 = vsub.s32 0, %v194
    %v196 = vrot.slane %v167, %v195
    %v197 = vlaneseq
    %v198 = vshrl.u32 %v197, 7
    %v199 = vsub.s32 0, %v198
    %v200 = vrot.slane %v181, %v199
    %v201 = vlaneseq
    %v202 = vshrl.u32 %v201, 7
    %v203 = vsub.s32 0, %v202
    %v204 = vrot.slane %v189, %v203
    %v205 = vlaneseq
    %v206 = vshrl.u32 %v205, 7
    %v207 = vsub.s32 0, %v206
    %v208 = vrot.slane %v191, %v207
    %v209 = vlaneseq
    %v210 = vshrl.u32 %v209, 7
    %v211 = vsub.s32 0, %v210
    %v212 = vrot.slane %v174, %v211
    %v213 = vlaneseq
    %v214 = vshrl.u32 %v213, 7
    %v215 = vsub.s32 0, %v214
    %v216 = vrot.slane %v188, %v215
    %v217 = vlaneseq
    %v218 = vshrl.u32 %v217, 7
    %v219 = vsub.s32 0, %v218
    %v220 = vrot.slane %v190, %v219
    %v221 = vlaneseq
    %v222 = vshrl.u32 %v221, 7
    %v223 = vsub.s32 0, %v222
    %v224 = vrot.slane %v192, %v223
    %v233 = vsub.f32 %v125, %v196
    %v234 = vsub.f32 %v125, %v200
    %v235 = vsub.f32 %v125, %v204
    %v236 = vsub.f32 %v125, %v208
    %v237 = vsub.f32 %v125, %v212
    %v238 = vsub.f32 %v125, %v216
    %v239 = vsub.f32 %v125, %v220
    %v240 = vsub.f32 %v125, %v224
    %v241 = vadd.f32 %v233, 0.1
    %v242 = vadd.f32 %v234, 0.1
    %v243 = vadd.f32 %v235, 0.1
    %v244 = vadd.f32 %v236, 0.1
    %v245 = vadd.f32 %v237, 0.1
    %v246 = vadd.f32 %v238, 0.1
    %v247 = vadd.f32 %v239, 0.1
    %v248 = vadd.f32 %v240, 0.1
    %v250 = vcombine.high %v140, %v140
    %v252 = vunpack.c.l.s4 1966171168
    %v253 = vunpack.c.0.s8 %v252
    %v254 = vlaneseq
    %v255 = vshrl.u32 %v254, 7
    %v256 = vsub.s32 %v253, %v255
    %v257 = vrot.slane %v140, %v256
    %v259 = vunpack.c.l.s4 1966171168
    %v260 = vunpack.c.0.s8 %v259
    %v261 = vlaneseq
    %v262 = vshrl.u32 %v261, 7
    %v263 = vsub.s32 %v260, %v262
    %v264 = vrot.slane %v250, %v263
    %v265 = vcombine.high %v257, %v257
    %v266 = vcombine.high %v264, %v264
    %v268 = vunpack.c.l.s4 1966171168
    %v269 = vunpack.c.0.s8 %v268
    %v270 = vlaneseq
    %v271 = vshrl.u32 %v270, 7
    %v272 = vsub.s32 %v269, %v271
    %v273 = vrot.slane %v257, %v272
    %v275 = vunpack.c.l.s4 1966171168
    %v276 = vunpack.c.0.s8 %v275
    %v277 = vlaneseq
    %v278 = vshrl.u32 %v277, 7
    %v279 = vsub.s32 %v276, %v278
    %v280 = vrot.slane %v264, %v279
    %v282 = vunpack.c.l.s4 1966171168
    %v283 = vunpack.c.0.s8 %v282
    %v284 = vlaneseq
    %v285 = vshrl.u32 %v284, 7
    %v286 = vsub.s32 %v283, %v285
    %v287 = vrot.slane %v265, %v286
    %v289 = vunpack.c.l.s4 1966171168
    %v290 = vunpack.c.0.s8 %v289
    %v291 = vlaneseq
    %v292 = vshrl.u32 %v291, 7
    %v293 = vsub.s32 %v290, %v292
    %v294 = vrot.slane %v266, %v293
    %v295 = vcombine.high %v273, %v273
    %v296 = vcombine.high %v280, %v280
    %v297 = vcombine.high %v287, %v287
    %v298 = vcombine.high %v294, %v294
    %v299 = vlaneseq
    %v300 = vshrl.u32 %v299, 7
    %v301 = vsub.s32 0, %v300
    %v302 = vrot.slane %v273, %v301
    %v303 = vlaneseq
    %v304 = vshrl.u32 %v303, 7
    %v305 = vsub.s32 0, %v304
    %v306 = vrot.slane %v287, %v305
    %v307 = vlaneseq
    %v308 = vshrl.u32 %v307, 7
    %v309 = vsub.s32 0, %v308
    %v310 = vrot.slane %v295, %v309
    %v311 = vlaneseq
    %v312 = vshrl.u32 %v311, 7
    %v313 = vsub.s32 0, %v312
    %v314 = vrot.slane %v297, %v313
    %v315 = vlaneseq
    %v316 = vshrl.u32 %v315, 7
    %v317 = vsub.s32 0, %v316
    %v318 = vrot.slane %v280, %v317
    %v319 = vlaneseq
    %v320 = vshrl.u32 %v319, 7
    %v321 = vsub.s32 0, %v320
    %v322 = vrot.slane %v294, %v321
    %v323 = vlaneseq
    %v324 = vshrl.u32 %v323, 7
    %v325 = vsub.s32 0, %v324
    %v326 = vrot.slane %v296, %v325
    %v327 = vlaneseq
    %v328 = vshrl.u32 %v327, 7
    %v329 = vsub.s32 0, %v328
    %v330 = vrot.slane %v298, %v329
    %v339 = vmul.f32 %v139, %v302
    %v340 = vmul.f32 %v139, %v306
    %v341 = vmul.f32 %v139, %v310
    %v342 = vmul.f32 %v139, %v314
    %v343 = vmul.f32 %v139, %v318
    %v344 = vmul.f32 %v139, %v322
    %v345 = vmul.f32 %v139, %v326
    %v346 = vmul.f32 %v139, %v330
    %v347 = vmul.f32 %v241, %v339
    %v348 = vmul.f32 %v242, %v340
    %v349 = vmul.f32 %v243, %v341
    %v350 = vmul.f32 %v244, %v342
    %v351 = vmul.f32 %v245, %v343
    %v352 = vmul.f32 %v246, %v344
    %v353 = vmul.f32 %v247, %v345
    %v354 = vmul.f32 %v248, %v346
    %v355 = vmax.f32 %v347, 0.0
    %v356 = vmax.f32 %v348, 0.0
    %v357 = vmax.f32 %v349, 0.0
    %v358 = vmax.f32 %v350, 0.0
    %v359 = vmax.f32 %v351, 0.0
    %v360 = vmax.f32 %v352, 0.0
    %v361 = vmax.f32 %v353, 0.0
    %v362 = vmax.f32 %v354, 0.0
    %v363 = vld [vmem:[#allocation2] sm:$0xff]
    %v364 = vsel %vm98, %v355, 0.0
    %v365 = vsel %vm98, %v356, 0.0
    %v366 = vadd.f32 %v364, %v365
    %v367 = vsel %vm98, %v357, 0.0
    %v368 = vadd.f32 %v366, %v367
    %v369 = vsel %vm98, %v358, 0.0
    %v370 = vadd.f32 %v368, %v369
    %v371 = vsel %vm98, %v359, 0.0
    %v372 = vadd.f32 %v370, %v371
    %v373 = vsel %vm98, %v360, 0.0
    %v374 = vadd.f32 %v372, %v373
    %v375 = vsel %vm98, %v361, 0.0
    %v376 = vadd.f32 %v374, %v375
    %v377 = vsel %vm98, %v362, 0.0
    %v378 = vadd.f32 %v376, %v377
    %v379 = vadd.f32 %v363, %v378
    %380 = vst.msk [vmem:[#allocation2] sm:$0xff] %vm98, %v379
    %v381 = vld [vmem:[#allocation3] sm:$0xff]
    %vm382 = vcmp.gt.f32.partialorder %v355, 1e-16
    %vm383 = vcmp.gt.f32.partialorder %v356, 1e-16
    %vm384 = vcmp.gt.f32.partialorder %v357, 1e-16
    %vm385 = vcmp.gt.f32.partialorder %v358, 1e-16
    %vm386 = vcmp.gt.f32.partialorder %v359, 1e-16
    %vm387 = vcmp.gt.f32.partialorder %v360, 1e-16
    %vm388 = vcmp.gt.f32.partialorder %v361, 1e-16
    %vm389 = vcmp.gt.f32.partialorder %v362, 1e-16
    %v390 = vsel %vm382, 1, 0
    %v391 = vsel %vm383, 1, 0
    %v392 = vsel %vm384, 1, 0
    %v393 = vsel %vm385, 1, 0
    %v394 = vsel %vm386, 1, 0
    %v395 = vsel %vm387, 1, 0
    %v396 = vsel %vm388, 1, 0
    %v397 = vsel %vm389, 1, 0
    %v398 = vcvt.s32.f32 %v390
    %v399 = vcvt.s32.f32 %v391
    %v400 = vcvt.s32.f32 %v392
    %v401 = vcvt.s32.f32 %v393
    %v402 = vcvt.s32.f32 %v394
    %v403 = vcvt.s32.f32 %v395
    %v404 = vcvt.s32.f32 %v396
    %v405 = vcvt.s32.f32 %v397
    %v406 = vsel %vm98, %v398, 0.0
    %v407 = vsel %vm98, %v399, 0.0
    %v408 = vadd.f32 %v406, %v407
    %v409 = vsel %vm98, %v400, 0.0
    %v410 = vadd.f32 %v408, %v409
    %v411 = vsel %vm98, %v401, 0.0
    %v412 = vadd.f32 %v410, %v411
    %v413 = vsel %vm98, %v402, 0.0
    %v414 = vadd.f32 %v412, %v413
    %v415 = vsel %vm98, %v403, 0.0
    %v416 = vadd.f32 %v414, %v415
    %v417 = vsel %vm98, %v404, 0.0
    %v418 = vadd.f32 %v416, %v417
    %v419 = vsel %vm98, %v405, 0.0
    %v420 = vadd.f32 %v418, %v419
    %v421 = vadd.f32 %v381, %v420
    %422 = vst.msk [vmem:[#allocation3] sm:$0xff] %vm98, %v421
    %v423 = vld [vmem:[#allocation2] sm:$0xff]
    %v424 = vsel %vm98, %v423, 0.0
    %425 = vadd.xlane.f32.xlu0 %v424
    %v426 = vpop.xlane.xlu0 %425
    %v427 = vrot.slane %v426, 4
    %v428 = vadd.f32 %v426, %v427
    %v429 = vrot.slane %v428, 2
    %v430 = vadd.f32 %v428, %v429
    %v431 = vrot.slane %v430, 1
    %v432 = vadd.f32 %v430, %v431
    %s433 = vtos %v432
    %v434 = vld [vmem:[#allocation3] sm:$0xff]
    %v435 = vsel %vm98, %v434, 0.0
    %436 = vadd.xlane.f32.xlu0 %v435
    %v437 = vpop.xlane.xlu0 %436
    %v438 = vrot.slane %v437, 4
    %v439 = vadd.f32 %v437, %v438
    %v440 = vrot.slane %v439, 2
    %v441 = vadd.f32 %v439, %v440
    %v442 = vrot.slane %v441, 1
    %v443 = vadd.f32 %v441, %v442
    %s444 = vtos %v443
    %s445 = sadd.f32 %s444, 1e-16
    %v446 = vstv %s445
    %v447 = vrcp.pop %v446
    %s448 = vtos %v447
    %s449 = smul.f32 %s433, %s448
    %s450 = scalar_lea.smem [#allocation4], 0
    %451 = sst [smem:[%s450]] %s449
    // Predicated region
    $region14: #{tpu_custom_call.1} parent=1 // pred_check
      _
    $region15: #{tpu_custom_call.1} parent=1 // pred_check_branch
      %453 = sbr.rel (0) target = $region17
    $region16: #{tpu_custom_call.1} parent=1 // pred_region
      %s455 = ssub.s32 16, 16
      %456 = vsyncadd [#allocation5], %s455
      %459 = dma.smem_to_hbm [#allocation4], 16, %s3, [#allocation5]
    $region17: #{tpu_custom_call.1} parent=1 // pred_fallthru
      _
    // Predicated region
    $region18: #{tpu_custom_call.1} parent=1 // pred_check
      _
    $region19: #{tpu_custom_call.1} parent=1 // pred_check_branch
      %461 = sbr.rel (0) target = $region21
    $region20: #{tpu_custom_call.1} parent=1 // pred_region
      %462 = dma.done [#allocation5], 16
    $region21: #{tpu_custom_call.1} parent=1 // pred_fallthru
      _
    %463 = sfence
    %464 = vsyncpa [#allocation5], 1

</llo_original>
